<compile_context>
chip_gen: v6e
topology: v6e:2x2x1
jax: 0.10.0
libtpu: 0.0.40
codegen_flags: <defaults>
</compile_context>

<pallas_src>
import functools
import math

import jax
import jax.numpy as jnp
from jax import lax
from jax.experimental import pallas as pl
from jax.experimental.pallas import tpu as pltpu

EPS = 1e-5


def layernorm_kernel(x_ref, scale_ref, shift_ref, o_ref, *, inv_d):
    # x_ref block: (row_tile, Dp); scale/shift blocks: (1, Dp) in f32.
    x = x_ref[...].astype(jnp.float32)
    s1 = jnp.sum(x, axis=-1, keepdims=True)           # sum(x)
    s2 = jnp.sum(x * x, axis=-1, keepdims=True)       # sum(x^2)  (independent reductions)
    mean = s1 * inv_d
    var = jnp.maximum(s2 * inv_d - mean * mean, 0.0)   # biased variance, clamped
    norm = (x - mean) * lax.rsqrt(var + EPS)           # rsqrt -> EUP slot
    out = scale_ref[...] * norm + shift_ref[...]
    o_ref[...] = out.astype(o_ref.dtype)


def _sublane_multiple(dtype):
    itemsize = jnp.dtype(dtype).itemsize
    return max(8, 32 // itemsize)   # 8 for f32, 16 for bf16, 32 for int8/fp8


def _pick_row_tile(n_rows, d_pad, dtype):
    """Byte-budgeted row tile: ~2 MiB x blocks, working set capped ~24 MiB."""
    itemsize = jnp.dtype(dtype).itemsize
    sub = _sublane_multiple(dtype)

    target_block_bytes = 2 << 20            # ~2 MiB x block (DMA roofline sweet spot)
    ws_budget_bytes = 24 << 20              # 2x in + 2x out (double-buffered) + f32 temps

    # Per-row working-set bytes: 2 in-bufs + 2 out-bufs (native dtype) + ~3 f32 temps.
    per_row_ws = d_pad * (4 * itemsize + 3 * 4)
    per_row_blk = d_pad * itemsize

    rows_by_target = max(sub, target_block_bytes // per_row_blk)
    rows_by_budget = max(sub, ws_budget_bytes // per_row_ws)

    # No point tiling larger than the (sublane-rounded-up) number of rows.
    rows_cap = pl.cdiv(n_rows, sub) * sub

    row_tile = min(rows_by_target, rows_by_budget, rows_cap)
    row_tile = max(sub, (row_tile // sub) * sub)      # round down to sublane multiple
    return int(row_tile)


def layernorm(x, scale, shift):
    """x: (..., D); scale/shift: (D,). Normalizes over the last dim."""
    orig_shape = x.shape
    D = orig_shape[-1]
    n_rows = math.prod(orig_shape[:-1]) if len(orig_shape) > 1 else 1

    # Flatten leading dims into one row axis.
    x2 = x.reshape(n_rows, D)

    # Pad D to a multiple of 128 for lane-dense stores.  Zero padding keeps the
    # statistics exact because we divide the padded-lane sums by the true D.
    Dp = max(128, pl.cdiv(D, 128) * 128)
    scale_f = scale.astype(jnp.float32)
    shift_f = shift.astype(jnp.float32)
    if Dp != D:
        x2 = jnp.pad(x2, ((0, 0), (0, Dp - D)))
        scale_f = jnp.pad(scale_f, (0, Dp - D))
        shift_f = jnp.pad(shift_f, (0, Dp - D))
    scale2 = scale_f.reshape(1, Dp)
    shift2 = shift_f.reshape(1, Dp)

    # Byte-budgeted row tile; pad rows (not a full-array fallback block).
    row_tile = _pick_row_tile(n_rows, Dp, x.dtype)
    n_rows_p = pl.cdiv(n_rows, row_tile) * row_tile
    if n_rows_p != n_rows:
        x2 = jnp.pad(x2, ((0, n_rows_p - n_rows), (0, 0)))

    grid = (n_rows_p // row_tile,)
    kernel = functools.partial(layernorm_kernel, inv_d=1.0 / float(D))

    out = pl.pallas_call(
        kernel,
        out_shape=jax.ShapeDtypeStruct((n_rows_p, Dp), x.dtype),
        grid=grid,
        in_specs=[
            pl.BlockSpec((row_tile, Dp), lambda r: (r, 0)),   # x row tile
            pl.BlockSpec((1, Dp), lambda r: (0, 0)),          # scale (VMEM-resident)
            pl.BlockSpec((1, Dp), lambda r: (0, 0)),          # shift (VMEM-resident)
        ],
        out_specs=pl.BlockSpec((row_tile, Dp), lambda r: (r, 0)),
        compiler_params=pltpu.CompilerParams(
            dimension_semantics=("parallel",),
            vmem_limit_bytes=32 << 20,
        ),
    )(x2, scale2, shift2)

    out = out[:n_rows, :D].reshape(orig_shape)
    return out


def _layernorm_ref(x, scale, shift):
    xf = x.astype(jnp.float32)
    mean = jnp.mean(xf, axis=-1, keepdims=True)
    var = jnp.mean((xf - mean) ** 2, axis=-1, keepdims=True)
    out = (scale.reshape(1, 1, -1).astype(jnp.float32) * (xf - mean) * lax.rsqrt(var + EPS)
           + shift.reshape(1, 1, -1).astype(jnp.float32))
    return out.astype(x.dtype)


if __name__ == "__main__":
    # Small shapes consistent with the module usage: (batch, seq, emb_dim).
    B, S, D = 2, 8, 32
    key = jax.random.PRNGKey(0)
    kx, ks, kb = jax.random.split(key, 3)
    x = jax.random.normal(kx, (B, S, D), jnp.float32)
    # Module init is ones / zeros; perturb deterministically so the affine part
    # of the kernel is actually exercised.
    scale = jnp.ones((D,), jnp.float32) + 0.01 * jax.random.normal(ks, (D,), jnp.float32)
    shift = jnp.zeros((D,), jnp.float32) + 0.01 * jax.random.normal(kb, (D,), jnp.float32)

    out = layernorm(x, scale, shift)
    out = jax.block_until_ready(out)
    assert out.shape == (B, S, D) and out.dtype == x.dtype

    ref = _layernorm_ref(x, scale, shift)
    assert jnp.allclose(out, ref, atol=1e-4, rtol=1e-4), "mismatch vs pure-JAX reference"
    print("KERNEL_OK")
</pallas_src>

<mosaic_0001>
module attributes {stable_mosaic.version = 11 : i64} {
  func.func @layernorm_kernel(%arg0: i32, %arg1: memref<16x128xf32, #tpu.memory_space<vmem>>, %arg2: memref<1x128xf32, #tpu.memory_space<vmem>>, %arg3: memref<1x128xf32, #tpu.memory_space<vmem>>, %arg4: memref<16x128xf32, #tpu.memory_space<vmem>>) attributes {dimension_semantics = [#tpu.dimension_semantics<parallel>], iteration_bounds = array<i64: 1>, scalar_prefetch = 0 : i64, scratch_operands = 0 : i64, tpu.core_type = #tpu.core_type<tc>, window_params = [{transform_indices = @transform_0, window_bounds = array<i64: 16, 128>}, {pipeline_mode = #tpu.pipeline_mode<synchronous>, transform_indices = @transform_1, window_bounds = array<i64: 1, 128>}, {pipeline_mode = #tpu.pipeline_mode<synchronous>, transform_indices = @transform_2, window_bounds = array<i64: 1, 128>}, {transform_indices = @transform_3, window_bounds = array<i64: 16, 128>}]} {
    %c0 = arith.constant 0 : index
    %c0_0 = arith.constant 0 : index
    %0 = vector.load %arg1[%c0, %c0_0] : memref<16x128xf32, #tpu.memory_space<vmem>>, vector<16x128xf32>
    %cst = arith.constant dense<0.000000e+00> : vector<16xf32>
    %1 = vector.multi_reduction <add>, %0, %cst [1] : vector<16x128xf32> to vector<16xf32>
    %2 = vector.shape_cast %1 : vector<16xf32> to vector<16x1xf32>
    %3 = arith.mulf %0, %0 : vector<16x128xf32>
    %cst_1 = arith.constant dense<0.000000e+00> : vector<16xf32>
    %4 = vector.multi_reduction <add>, %3, %cst_1 [1] : vector<16x128xf32> to vector<16xf32>
    %5 = vector.shape_cast %4 : vector<16xf32> to vector<16x1xf32>
    %cst_2 = arith.constant 3.125000e-02 : f32
    %6 = vector.broadcast %cst_2 : f32 to vector<16x1xf32>
    %7 = arith.mulf %2, %6 : vector<16x1xf32>
    %cst_3 = arith.constant 3.125000e-02 : f32
    %8 = vector.broadcast %cst_3 : f32 to vector<16x1xf32>
    %9 = arith.mulf %5, %8 : vector<16x1xf32>
    %10 = arith.mulf %7, %7 : vector<16x1xf32>
    %11 = arith.subf %9, %10 : vector<16x1xf32>
    %cst_4 = arith.constant 0.000000e+00 : f32
    %12 = vector.broadcast %cst_4 : f32 to vector<16x1xf32>
    %13 = arith.maximumf %11, %12 : vector<16x1xf32>
    %14 = vector.broadcast %7 : vector<16x1xf32> to vector<16x128xf32>
    %15 = arith.subf %0, %14 : vector<16x128xf32>
    %cst_5 = arith.constant 9.99999974E-6 : f32
    %16 = vector.broadcast %cst_5 : f32 to vector<16x1xf32>
    %17 = arith.addf %13, %16 : vector<16x1xf32>
    %18 = math.rsqrt %17 : vector<16x1xf32>
    %19 = vector.broadcast %18 : vector<16x1xf32> to vector<16x128xf32>
    %20 = arith.mulf %15, %19 : vector<16x128xf32>
    %c0_6 = arith.constant 0 : index
    %c0_7 = arith.constant 0 : index
    %21 = vector.load %arg2[%c0_6, %c0_7] : memref<1x128xf32, #tpu.memory_space<vmem>>, vector<1x128xf32>
    %22 = vector.broadcast %21 : vector<1x128xf32> to vector<16x128xf32>
    %23 = arith.mulf %22, %20 : vector<16x128xf32>
    %c0_8 = arith.constant 0 : index
    %c0_9 = arith.constant 0 : index
    %24 = vector.load %arg3[%c0_8, %c0_9] : memref<1x128xf32, #tpu.memory_space<vmem>>, vector<1x128xf32>
    %25 = vector.broadcast %24 : vector<1x128xf32> to vector<16x128xf32>
    %26 = arith.addf %23, %25 : vector<16x128xf32>
    %c0_10 = arith.constant 0 : index
    %c0_11 = arith.constant 0 : index
    %27 = vector.load %arg4[%c0_10, %c0_11] : memref<16x128xf32, #tpu.memory_space<vmem>>, vector<16x128xf32>
    tpu.vector_store %arg4[%c0_10, %c0_11], %26 {strides = array<i32>} : memref<16x128xf32, #tpu.memory_space<vmem>>, vector<16x128xf32>,
    return
  }
  func.func @transform_0(%arg0: i32) -> (i32, i32) {
    %c0_i32 = arith.constant 0 : i32
    %c0_i32_0 = arith.constant 0 : i32
    return %arg0, %c0_i32 : i32, i32
  }
  func.func @transform_1(%arg0: i32) -> (i32, i32) {
    %c0_i32 = arith.constant 0 : i32
    %c0_i32_0 = arith.constant 0 : i32
    %c0_i32_1 = arith.constant 0 : i32
    return %c0_i32, %c0_i32_0 : i32, i32
  }
  func.func @transform_2(%arg0: i32) -> (i32, i32) {
    %c0_i32 = arith.constant 0 : i32
    %c0_i32_0 = arith.constant 0 : i32
    %c0_i32_1 = arith.constant 0 : i32
    return %c0_i32, %c0_i32_0 : i32, i32
  }
  func.func @transform_3(%arg0: i32) -> (i32, i32) {
    %c0_i32 = arith.constant 0 : i32
    %c0_i32_0 = arith.constant 0 : i32
    return %arg0, %c0_i32 : i32, i32
  }
}

</mosaic_0001>

<llo_original>
// kernel: tpu_custom_call.1
$region0: #{tpu_custom_call.1}
  #allocation0 [shape = 'u32[]', space=smem, size = 0x4, offset = 0x4, fixed_abs, tag = 'smem constant byte address 0x4 - core index']
  #allocation1 [shape = 'u32[144,128]{1,0:T(1,128)}', space=vmem, size = 0x12000, scoped, tag = 'internal scratch']
  %s0 = inlined_call_operand.hbm [shape: f32[16,128], index: 0, kind: input, shape index: {}]
  %s1 = inlined_call_operand.vmem [shape: f32[1,128], index: 1, kind: input, shape index: {}]
  %s2 = inlined_call_operand.vmem [shape: f32[1,128], index: 2, kind: input, shape index: {}]
  %s3 = inlined_call_operand.hbm [shape: f32[16,128], index: 3, kind: output, shape index: {}]
  %s4 = sld [smem:[#allocation0]]
  $region26: #{tpu_custom_call.1} parent=0
    _
  %s6 = ssub.s32 1, %s4
  %s7 = scalar_select 0, %s6, %s4
  $region1: #{tpu_custom_call.1} parent=0
    #allocation2 [shape = 'u8[8192]{0}', space=vmem, size = 0x2000, scoped, tag = 'input window, operand 0, single buffered']
    #allocation3 [shape = 's32[1]{0}', space=sflag, size = 0x4, scoped, tag = 'scoped memory for tpu_custom_call.1']
    #allocation4 [shape = 's32[1]{0}', space=sflag, size = 0x4, scoped, tag = 'scoped memory for tpu_custom_call.1']
    #allocation5 [shape = 'u8[8192]{0}', space=vmem, size = 0x2000, scoped, tag = 'output window, operand 0, single buffered']
    %8 = vsyncpa [#allocation3], 0
    %9 = vsyncpa [#allocation4], 0
    // Predicated region
    $region2: #{tpu_custom_call.1} parent=1 // pred_check
      _
    $region3: #{tpu_custom_call.1} parent=1 // pred_check_branch
      %11 = sbr.rel (0) target = $region5
    $region4: #{tpu_custom_call.1} parent=1 // pred_region
      %s13 = ssub.s32 256, 256
      %14 = vsyncadd [#allocation3], %s13
      %s15 = sshll.u32 [#allocation2], 4
      %s16 = int_to_ptr.vmem [resolvable:$true] %s15
      %21 = dma.hbm_to_vmem [thread:$0]  %s0, 256, %s16, [#allocation3], 128, 128, 8
    $region5: #{tpu_custom_call.1} parent=1 // pred_fallthru
      _
    // Predicated region
    $region6: #{tpu_custom_call.1} parent=1 // pred_check
      _
    $region7: #{tpu_custom_call.1} parent=1 // pred_check_branch
      %23 = sbr.rel (0) target = $region9
    $region8: #{tpu_custom_call.1} parent=1 // pred_region
      _
    $region9: #{tpu_custom_call.1} parent=1 // pred_fallthru
      _
    // Predicated region
    $region10: #{tpu_custom_call.1} parent=1 // pred_check
      _
    $region11: #{tpu_custom_call.1} parent=1 // pred_check_branch
      %25 = sbr.rel (0) target = $region13
    $region12: #{tpu_custom_call.1} parent=1 // pred_region
      _
    $region13: #{tpu_custom_call.1} parent=1 // pred_fallthru
      _
    // Predicated region
    $region14: #{tpu_custom_call.1} parent=1 // pred_check
      _
    $region15: #{tpu_custom_call.1} parent=1 // pred_check_branch
      %27 = sbr.rel (0) target = $region17
    $region16: #{tpu_custom_call.1} parent=1 // pred_region
      %28 = dma.done [#allocation3], 256
    $region17: #{tpu_custom_call.1} parent=1 // pred_fallthru
      _
    %v29 = vld [vmem:[#allocation2] sm:$0xff]
    %v30 = vld [vmem:[#allocation2 + $0x8] sm:$0xff]
    %31 = vadd.xlane.f32.xlu0 %v29
    %v32 = vpop.xlane.xlu0 %31
    %33 = vadd.xlane.f32.xlu0 %v30
    %v34 = vpop.xlane.xlu0 %33
    %v35 = vmul.f32 %v29, %v29
    %v36 = vmul.f32 %v30, %v30
    %37 = vadd.xlane.f32.xlu0 %v35
    %v38 = vpop.xlane.xlu0 %37
    %39 = vadd.xlane.f32.xlu0 %v36
    %v40 = vpop.xlane.xlu0 %39
    %v41 = vmul.f32 %v32, 0.03125
    %v42 = vmul.f32 %v34, 0.03125
    %v43 = vmul.f32 %v38, 0.03125
    %v44 = vmul.f32 %v40, 0.03125
    %v45 = vmul.f32 %v41, %v41
    %v46 = vmul.f32 %v42, %v42
    %v47 = vsub.f32 %v43, %v45
    %v48 = vsub.f32 %v44, %v46
    %v49 = vmax.f32 %v47, 0.0
    %v50 = vmax.f32 %v48, 0.0
    %v51 = vsub.f32 %v29, %v41
    %v52 = vsub.f32 %v30, %v42
    %v53 = vadd.f32 %v49, 1e-05
    %v54 = vadd.f32 %v50, 1e-05
    %v55 = vrsqrt.pop %v53
    %v56 = vrsqrt.pop %v54
    %v57 = vmul.f32 %v51, %v55
    %v58 = vmul.f32 %v52, %v56
    %v59 = vld [vmem:[%s1] sm:$0x1]
    %v61 = vlaneseq
    %v62 = vshrl.u32 %v61, 7
    %v63 = vsub.s32 0, %v62
    %v64 = vrot.slane %v59, %v63
    %v66 = vmul.f32 %v64, %v57
    %v67 = vmul.f32 %v64, %v58
    %v68 = vld [vmem:[%s2] sm:$0x1]
    %v70 = vlaneseq
    %v71 = vshrl.u32 %v70, 7
    %v72 = vsub.s32 0, %v71
    %v73 = vrot.slane %v68, %v72
    %v75 = vadd.f32 %v66, %v73
    %v76 = vadd.f32 %v67, %v73
    %77 = vst [vmem:[#allocation5] sm:$0xff] %v75
    %78 = vst [vmem:[#allocation5 + $0x8] sm:$0xff] %v76
    // Predicated region
    $region18: #{tpu_custom_call.1} parent=1 // pred_check
      _
    $region19: #{tpu_custom_call.1} parent=1 // pred_check_branch
      %80 = sbr.rel (0) target = $region21
    $region20: #{tpu_custom_call.1} parent=1 // pred_region
      %s82 = ssub.s32 256, 256
      %83 = vsyncadd [#allocation4], %s82
      %s84 = sshll.u32 [#allocation5], 4
      %s85 = int_to_ptr.vmem [resolvable:$true] %s84
      %90 = dma.vmem_to_hbm [thread:$0]  %s85, 256, %s3, [#allocation4], 128, 128, 8
    $region21: #{tpu_custom_call.1} parent=1 // pred_fallthru
      _
    // Predicated region
    $region22: #{tpu_custom_call.1} parent=1 // pred_check
      _
    $region23: #{tpu_custom_call.1} parent=1 // pred_check_branch
      %92 = sbr.rel (0) target = $region25
    $region24: #{tpu_custom_call.1} parent=1 // pred_region
      %93 = dma.done [#allocation4], 256
    $region25: #{tpu_custom_call.1} parent=1 // pred_fallthru
      _
    %94 = vsyncpa [#allocation3], 1
    %95 = vsyncpa [#allocation4], 1

</llo_original>
